<compile_context>
chip_gen: v6e
topology: v6e:2x2x1
jax: 0.10.0
libtpu: 0.0.40
codegen_flags: <defaults>
</compile_context>

<pallas_src>
import jax
import jax.numpy as jnp
from jax.experimental import pallas as pl
from jax.experimental.pallas import tpu as pltpu


NEG_SLOPE = 0.01   # nn.LeakyReLU default negative_slope
HIDDEN = 100       # logical hidden width from the PyTorch module
H_PAD = 128        # padded hidden width (lane-aligned)
OUT_PAD = 128      # padded output width (lane-dense, unmasked stores)


def _leaky_relu(v):
    # Valid because 0 < NEG_SLOPE < 1: cheaper than where(cmp, v, a*v) on the VPU.
    return jnp.maximum(v, NEG_SLOPE * v)


def _round_up(x, m):
    return ((x + m - 1) // m) * m


# --------------------------------------------------------------------------
# Kernel: whole 5-layer forward pass for one batch tile.
# --------------------------------------------------------------------------
def mlp_kernel(x_ref, w_in_ref, ws_ref, w_out_ref, b_ref, out_ref):
    # Layer 0: [TB, obs] @ [obs, H_PAD]  (bf16 operands, f32 accumulation).
    # astype is a no-op if the caller already supplies bf16 activations.
    h = jnp.dot(x_ref[...].astype(jnp.bfloat16), w_in_ref[...],
                preferred_element_type=jnp.float32)
    h = _leaky_relu(h + b_ref[0:1, :])

    # Hidden layers 1..3: [TB, H_PAD] @ [H_PAD, H_PAD]
    for i in range(3):
        h = jnp.dot(h.astype(jnp.bfloat16), ws_ref[i],
                    preferred_element_type=jnp.float32)
        h = _leaky_relu(h + b_ref[i + 1:i + 2, :])

    # Output layer (no activation); bf16 store halves the HBM writeback.
    out = jnp.dot(h.astype(jnp.bfloat16), w_out_ref[...],
                  preferred_element_type=jnp.float32)
    out_ref[...] = (out + b_ref[4:5, :]).astype(out_ref.dtype)


# --------------------------------------------------------------------------
# Parameter construction / packing.
# --------------------------------------------------------------------------
def init_params(key, obs_size, n_act, hidden=HIDDEN):
    """Unpadded f32 params, weights stored [in, out] (PyTorch W transposed)."""
    dims = [(obs_size, hidden), (hidden, hidden), (hidden, hidden),
            (hidden, hidden), (hidden, n_act)]
    params = []
    for d_in, d_out in dims:
        key, kw, kb = jax.random.split(key, 3)
        scale = 1.0 / jnp.sqrt(jnp.float32(d_in))
        w = jax.random.uniform(kw, (d_in, d_out), jnp.float32, -scale, scale)
        b = jax.random.uniform(kb, (d_out,), jnp.float32, -scale, scale)
        params.append((w, b))
    return params


def pack_params(params):
    """Pad to lane-aligned widths and pack into 4 arrays (bf16 weights)."""
    (w0, b0), (w1, b1), (w2, b2), (w3, b3), (w4, b4) = params

    def pad_w(w, rows, cols):
        out = jnp.zeros((rows, cols), jnp.float32)
        return out.at[:w.shape[0], :w.shape[1]].set(w)

    def pad_b(b, cols):
        out = jnp.zeros((cols,), jnp.float32)
        return out.at[:b.shape[0]].set(b)

    obs = w0.shape[0]
    w_in = pad_w(w0, obs, H_PAD).astype(jnp.bfloat16)                # [obs, 128]
    ws = jnp.stack([pad_w(w, H_PAD, H_PAD) for w in (w1, w2, w3)]
                   ).astype(jnp.bfloat16)                            # [3, 128, 128]
    w_out = pad_w(w4, H_PAD, OUT_PAD).astype(jnp.bfloat16)           # [128, 128]
    biases = jnp.stack([pad_b(b0, H_PAD), pad_b(b1, H_PAD),
                        pad_b(b2, H_PAD), pad_b(b3, H_PAD),
                        pad_b(b4, OUT_PAD)])                         # [5, 128] f32
    return w_in, ws, w_out, biases


# --------------------------------------------------------------------------
# Batch-tile selection (perf-review heuristic).
# --------------------------------------------------------------------------
def _choose_tb(B):
    """Big tiles for big batches, but keep >= 2 grid steps (v7x 2-TC sharding)."""
    if B <= 256:
        return _round_up(B, 16)          # single tile, 16-row bf16 alignment
    if B >= 4096:
        return 1024                      # >= 4 grid steps
    if B >= 1024:
        return 512                       # >= 2 grid steps
    return 256                           # >= 2 grid steps


# --------------------------------------------------------------------------
# Wrapper: batch grid, weights VMEM-resident across grid steps.
# --------------------------------------------------------------------------
def mlp_forward(x, packed, n_act):
    """x: [B, obs] in f32 or bf16 (bf16 halves the input HBM stream)."""
    w_in, ws, w_out, biases = packed
    B, obs = x.shape

    TB = _choose_tb(B)
    if B <= 256:
        # Single tile: tiny tail-pad only (so block == full array dim).
        if TB != B:
            x = jnp.pad(x, ((0, TB - B), (0, 0)))
        rows = TB
    else:
        # Large batch: no wrapper-side jnp.pad; ragged last tile is handled by
        # Pallas block masking (extra rows are garbage but never read back).
        rows = B
    grid = (pl.cdiv(rows, TB),)

    # CompilerParams: parallel batch axis; VMEM guard only if a huge TB sweep
    # would exceed v5e's 16 MiB default scoped limit (never at TB <= 1024).
    cp_kwargs = dict(dimension_semantics=("parallel",))
    vmem_est = (
        2 * TB * obs * x.dtype.itemsize                               # x, 2 bufs
        + 2 * TB * OUT_PAD * 2                                        # bf16 out, 2 bufs
        + 2 * 2 * (obs * H_PAD + 3 * H_PAD * H_PAD + H_PAD * OUT_PAD)  # bf16 weights
        + 2 * 5 * H_PAD * 4                                           # biases
        + 8 * TB * H_PAD * 4                                          # f32 intermediates
    )
    if vmem_est > 12 * 1024 * 1024:
        cp_kwargs["vmem_limit_bytes"] = min(2 * vmem_est, 48 * 1024 * 1024)

    out_padded = pl.pallas_call(
        mlp_kernel,
        out_shape=jax.ShapeDtypeStruct((rows, OUT_PAD), jnp.bfloat16),
        grid=grid,
        in_specs=[
            pl.BlockSpec((TB, obs), lambda i: (i, 0)),            # x tile per step
            pl.BlockSpec((obs, H_PAD), lambda i: (0, 0)),         # weights resident
            pl.BlockSpec((3, H_PAD, H_PAD), lambda i: (0, 0, 0)),
            pl.BlockSpec((H_PAD, OUT_PAD), lambda i: (0, 0)),
            pl.BlockSpec((5, H_PAD), lambda i: (0, 0)),
        ],
        out_specs=pl.BlockSpec((TB, OUT_PAD), lambda i: (i, 0)),
        compiler_params=pltpu.CompilerParams(**cp_kwargs),
    )(x, w_in, ws, w_out, biases)

    return out_padded[:B, :n_act].astype(jnp.float32)


# --------------------------------------------------------------------------
# Plain-JAX reference (same bf16-operand / f32-accumulate matmul recipe).
# --------------------------------------------------------------------------
def reference_forward(x, params):
    h = x
    n = len(params)
    for idx, (w, b) in enumerate(params):
        h = jnp.dot(h.astype(jnp.bfloat16), w.astype(jnp.bfloat16),
                    preferred_element_type=jnp.float32) + b
        if idx < n - 1:
            h = _leaky_relu(h)
    return h


if __name__ == "__main__":
    # Small shapes consistent with the module's forward: x is [batch, obs].
    obs_size, n_act = 32, 4
    key = jax.random.PRNGKey(0)
    params = init_params(key, obs_size, n_act)
    packed = pack_params(params)

    # --- Test 1: tiny batch (single-tile path, f32 input) ------------------
    batch = 8
    key, kx = jax.random.split(key)
    x = jax.random.normal(kx, (batch, obs_size), jnp.float32)
    out = jax.block_until_ready(mlp_forward(x, packed, n_act))
    ref = reference_forward(x, params)
    assert out.shape == (batch, n_act)
    assert jnp.allclose(out, ref, atol=2e-2, rtol=2e-2), "mismatch (small batch)"

    # --- Test 2: ragged larger batch (grid=2, partial last tile, bf16 input)
    batch2 = 272   # > 256 -> TB=256, grid=(2,), last tile partial (16 rows)
    key, kx2 = jax.random.split(key)
    x2 = jax.random.normal(kx2, (batch2, obs_size), jnp.float32).astype(jnp.bfloat16)
    out2 = jax.block_until_ready(mlp_forward(x2, packed, n_act))
    ref2 = reference_forward(x2, params)
    assert out2.shape == (batch2, n_act)
    assert jnp.allclose(out2, ref2, atol=2e-2, rtol=2e-2), "mismatch (ragged batch)"

    print("KERNEL_OK")
</pallas_src>

<mosaic_0001>
module attributes {stable_mosaic.version = 11 : i64} {
  func.func @mlp_kernel(%arg0: i32, %arg1: memref<16x32xf32, #tpu.memory_space<vmem>>, %arg2: memref<32x128xbf16, #tpu.memory_space<vmem>>, %arg3: memref<3x128x128xbf16, #tpu.memory_space<vmem>>, %arg4: memref<128x128xbf16, #tpu.memory_space<vmem>>, %arg5: memref<5x128xf32, #tpu.memory_space<vmem>>, %arg6: memref<16x128xbf16, #tpu.memory_space<vmem>>) attributes {dimension_semantics = [#tpu.dimension_semantics<parallel>], iteration_bounds = array<i64: 1>, scalar_prefetch = 0 : i64, scratch_operands = 0 : i64, tpu.core_type = #tpu.core_type<tc>, window_params = [{transform_indices = @transform_0, window_bounds = array<i64: 16, 32>}, {pipeline_mode = #tpu.pipeline_mode<synchronous>, transform_indices = @transform_1, window_bounds = array<i64: 32, 128>}, {pipeline_mode = #tpu.pipeline_mode<synchronous>, transform_indices = @transform_2, window_bounds = array<i64: 3, 128, 128>}, {pipeline_mode = #tpu.pipeline_mode<synchronous>, transform_indices = @transform_3, window_bounds = array<i64: 128, 128>}, {pipeline_mode = #tpu.pipeline_mode<synchronous>, transform_indices = @transform_4, window_bounds = array<i64: 5, 128>}, {transform_indices = @transform_5, window_bounds = array<i64: 16, 128>}]} {
    %c0 = arith.constant 0 : index
    %c0_0 = arith.constant 0 : index
    %0 = vector.load %arg1[%c0, %c0_0] : memref<16x32xf32, #tpu.memory_space<vmem>>, vector<16x32xf32>
    %1 = arith.truncf %0 : vector<16x32xf32> to vector<16x32xbf16>
    %c0_1 = arith.constant 0 : index
    %c0_2 = arith.constant 0 : index
    %2 = vector.load %arg2[%c0_1, %c0_2] : memref<32x128xbf16, #tpu.memory_space<vmem>>, vector<32x128xbf16>
    %cst = arith.constant dense<0.000000e+00> : vector<16x128xf32>
    %3 = tpu.matmul %1, %2, %cst {dimension_numbers = #tpu.dot_dimension_numbers<[1], [0], [0], [1], [0, 0, 1, 1], [], []>} : vector<16x32xbf16>, vector<32x128xbf16>, vector<16x128xf32> -> vector<16x128xf32>
    %c0_3 = arith.constant 0 : index
    %c0_4 = arith.constant 0 : index
    %4 = vector.load %arg5[%c0_3, %c0_4] : memref<5x128xf32, #tpu.memory_space<vmem>>, vector<1x128xf32>
    %5 = vector.broadcast %4 : vector<1x128xf32> to vector<16x128xf32>
    %6 = arith.addf %3, %5 : vector<16x128xf32>
    %cst_5 = arith.constant 0.00999999977 : f32
    %7 = vector.broadcast %cst_5 : f32 to vector<16x128xf32>
    %8 = arith.mulf %7, %6 : vector<16x128xf32>
    %9 = arith.maximumf %6, %8 : vector<16x128xf32>
    %10 = arith.truncf %9 : vector<16x128xf32> to vector<16x128xbf16>
    %c0_6 = arith.constant 0 : index
    %c0_7 = arith.constant 0 : index
    %c0_8 = arith.constant 0 : index
    %11 = vector.load %arg3[%c0_6, %c0_7, %c0_8] : memref<3x128x128xbf16, #tpu.memory_space<vmem>>, vector<1x128x128xbf16>
    %12 = vector.shape_cast %11 : vector<1x128x128xbf16> to vector<128x128xbf16>
    %cst_9 = arith.constant dense<0.000000e+00> : vector<16x128xf32>
    %13 = tpu.matmul %10, %12, %cst_9 {dimension_numbers = #tpu.dot_dimension_numbers<[1], [0], [0], [1], [0, 0, 1, 1], [], []>} : vector<16x128xbf16>, vector<128x128xbf16>, vector<16x128xf32> -> vector<16x128xf32>
    %c1 = arith.constant 1 : index
    %c0_10 = arith.constant 0 : index
    %14 = vector.load %arg5[%c1, %c0_10] : memref<5x128xf32, #tpu.memory_space<vmem>>, vector<1x128xf32>
    %15 = vector.broadcast %14 : vector<1x128xf32> to vector<16x128xf32>
    %16 = arith.addf %13, %15 : vector<16x128xf32>
    %cst_11 = arith.constant 0.00999999977 : f32
    %17 = vector.broadcast %cst_11 : f32 to vector<16x128xf32>
    %18 = arith.mulf %17, %16 : vector<16x128xf32>
    %19 = arith.maximumf %16, %18 : vector<16x128xf32>
    %20 = arith.truncf %19 : vector<16x128xf32> to vector<16x128xbf16>
    %c1_12 = arith.constant 1 : index
    %c0_13 = arith.constant 0 : index
    %c0_14 = arith.constant 0 : index
    %21 = vector.load %arg3[%c1_12, %c0_13, %c0_14] : memref<3x128x128xbf16, #tpu.memory_space<vmem>>, vector<1x128x128xbf16>
    %22 = vector.shape_cast %21 : vector<1x128x128xbf16> to vector<128x128xbf16>
    %cst_15 = arith.constant dense<0.000000e+00> : vector<16x128xf32>
    %23 = tpu.matmul %20, %22, %cst_15 {dimension_numbers = #tpu.dot_dimension_numbers<[1], [0], [0], [1], [0, 0, 1, 1], [], []>} : vector<16x128xbf16>, vector<128x128xbf16>, vector<16x128xf32> -> vector<16x128xf32>
    %c2 = arith.constant 2 : index
    %c0_16 = arith.constant 0 : index
    %24 = vector.load %arg5[%c2, %c0_16] : memref<5x128xf32, #tpu.memory_space<vmem>>, vector<1x128xf32>
    %25 = vector.broadcast %24 : vector<1x128xf32> to vector<16x128xf32>
    %26 = arith.addf %23, %25 : vector<16x128xf32>
    %cst_17 = arith.constant 0.00999999977 : f32
    %27 = vector.broadcast %cst_17 : f32 to vector<16x128xf32>
    %28 = arith.mulf %27, %26 : vector<16x128xf32>
    %29 = arith.maximumf %26, %28 : vector<16x128xf32>
    %30 = arith.truncf %29 : vector<16x128xf32> to vector<16x128xbf16>
    %c2_18 = arith.constant 2 : index
    %c0_19 = arith.constant 0 : index
    %c0_20 = arith.constant 0 : index
    %31 = vector.load %arg3[%c2_18, %c0_19, %c0_20] : memref<3x128x128xbf16, #tpu.memory_space<vmem>>, vector<1x128x128xbf16>
    %32 = vector.shape_cast %31 : vector<1x128x128xbf16> to vector<128x128xbf16>
    %cst_21 = arith.constant dense<0.000000e+00> : vector<16x128xf32>
    %33 = tpu.matmul %30, %32, %cst_21 {dimension_numbers = #tpu.dot_dimension_numbers<[1], [0], [0], [1], [0, 0, 1, 1], [], []>} : vector<16x128xbf16>, vector<128x128xbf16>, vector<16x128xf32> -> vector<16x128xf32>
    %c3 = arith.constant 3 : index
    %c0_22 = arith.constant 0 : index
    %34 = vector.load %arg5[%c3, %c0_22] : memref<5x128xf32, #tpu.memory_space<vmem>>, vector<1x128xf32>
    %35 = vector.broadcast %34 : vector<1x128xf32> to vector<16x128xf32>
    %36 = arith.addf %33, %35 : vector<16x128xf32>
    %cst_23 = arith.constant 0.00999999977 : f32
    %37 = vector.broadcast %cst_23 : f32 to vector<16x128xf32>
    %38 = arith.mulf %37, %36 : vector<16x128xf32>
    %39 = arith.maximumf %36, %38 : vector<16x128xf32>
    %40 = arith.truncf %39 : vector<16x128xf32> to vector<16x128xbf16>
    %c0_24 = arith.constant 0 : index
    %c0_25 = arith.constant 0 : index
    %41 = vector.load %arg4[%c0_24, %c0_25] : memref<128x128xbf16, #tpu.memory_space<vmem>>, vector<128x128xbf16>
    %cst_26 = arith.constant dense<0.000000e+00> : vector<16x128xf32>
    %42 = tpu.matmul %40, %41, %cst_26 {dimension_numbers = #tpu.dot_dimension_numbers<[1], [0], [0], [1], [0, 0, 1, 1], [], []>} : vector<16x128xbf16>, vector<128x128xbf16>, vector<16x128xf32> -> vector<16x128xf32>
    %c4 = arith.constant 4 : index
    %c0_27 = arith.constant 0 : index
    %43 = vector.load %arg5[%c4, %c0_27] : memref<5x128xf32, #tpu.memory_space<vmem>>, vector<1x128xf32>
    %44 = vector.broadcast %43 : vector<1x128xf32> to vector<16x128xf32>
    %45 = arith.addf %42, %44 : vector<16x128xf32>
    %46 = arith.truncf %45 : vector<16x128xf32> to vector<16x128xbf16>
    %c0_28 = arith.constant 0 : index
    %c0_29 = arith.constant 0 : index
    %47 = vector.load %arg6[%c0_28, %c0_29] : memref<16x128xbf16, #tpu.memory_space<vmem>>, vector<16x128xbf16>
    tpu.vector_store %arg6[%c0_28, %c0_29], %46 {strides = array<i32>} : memref<16x128xbf16, #tpu.memory_space<vmem>>, vector<16x128xbf16>,
    return
  }
  func.func @transform_0(%arg0: i32) -> (i32, i32) {
    %c0_i32 = arith.constant 0 : i32
    %c0_i32_0 = arith.constant 0 : i32
    return %arg0, %c0_i32 : i32, i32
  }
  func.func @transform_1(%arg0: i32) -> (i32, i32) {
    %c0_i32 = arith.constant 0 : i32
    %c0_i32_0 = arith.constant 0 : i32
    %c0_i32_1 = arith.constant 0 : i32
    return %c0_i32, %c0_i32_0 : i32, i32
  }
  func.func @transform_2(%arg0: i32) -> (i32, i32, i32) {
    %c0_i32 = arith.constant 0 : i32
    %c0_i32_0 = arith.constant 0 : i32
    %c0_i32_1 = arith.constant 0 : i32
    %c0_i32_2 = arith.constant 0 : i32
    return %c0_i32, %c0_i32_0, %c0_i32_1 : i32, i32, i32
  }
  func.func @transform_3(%arg0: i32) -> (i32, i32) {
    %c0_i32 = arith.constant 0 : i32
    %c0_i32_0 = arith.constant 0 : i32
    %c0_i32_1 = arith.constant 0 : i32
    return %c0_i32, %c0_i32_0 : i32, i32
  }
  func.func @transform_4(%arg0: i32) -> (i32, i32) {
    %c0_i32 = arith.constant 0 : i32
    %c0_i32_0 = arith.constant 0 : i32
    %c0_i32_1 = arith.constant 0 : i32
    return %c0_i32, %c0_i32_0 : i32, i32
  }
  func.func @transform_5(%arg0: i32) -> (i32, i32) {
    %c0_i32 = arith.constant 0 : i32
    %c0_i32_0 = arith.constant 0 : i32
    return %arg0, %c0_i32 : i32, i32
  }
}

</mosaic_0001>

<llo_original>
// kernel: tpu_custom_call.1
$region0: #{tpu_custom_call.1}
  #allocation0 [shape = 'u32[]', space=smem, size = 0x4, offset = 0x4, fixed_abs, tag = 'smem constant byte address 0x4 - core index']
  #allocation1 [shape = 'u32[144,128]{1,0:T(1,128)}', space=vmem, size = 0x12000, scoped, tag = 'internal scratch']
  %s0 = inlined_call_operand.hbm [shape: f32[16,32], index: 0, kind: input, shape index: {}]
  %s1 = inlined_call_operand.hbm [shape: bf16[32,128], index: 1, kind: input, shape index: {}]
  %s2 = inlined_call_operand.hbm [shape: bf16[3,128,128], index: 2, kind: input, shape index: {}]
  %s3 = inlined_call_operand.hbm [shape: bf16[128,128], index: 3, kind: input, shape index: {}]
  %s4 = inlined_call_operand.hbm [shape: f32[5,128], index: 4, kind: input, shape index: {}]
  %s5 = inlined_call_operand.hbm [shape: bf16[16,128], index: 5, kind: output, shape index: {}]
  %s6 = sld [smem:[#allocation0]]
  $region50: #{tpu_custom_call.1} parent=0
    _
  %s8 = ssub.s32 1, %s6
  %s9 = scalar_select 0, %s8, %s6
  $region1: #{tpu_custom_call.1} parent=0
    #allocation2 [shape = 'u8[8192]{0}', space=vmem, size = 0x2000, scoped, tag = 'input window, operand 0, single buffered']
    #allocation3 [shape = 's32[1]{0}', space=sflag, size = 0x4, scoped, tag = 'scoped memory for tpu_custom_call.1']
    #allocation4 [shape = 's32[1]{0}', space=sflag, size = 0x4, scoped, tag = 'scoped memory for tpu_custom_call.1']
    #allocation5 [shape = 'u8[8192]{0}', space=vmem, size = 0x2000, scoped, tag = 'input window, operand 1, single buffered']
    #allocation6 [shape = 's32[1]{0}', space=sflag, size = 0x4, scoped, tag = 'scoped memory for tpu_custom_call.1']
    #allocation7 [shape = 'u8[98304]{0}', space=vmem, size = 0x18000, scoped, tag = 'input window, operand 2, single buffered']
    #allocation8 [shape = 'u8[32768]{0}', space=vmem, size = 0x8000, scoped, tag = 'input window, operand 3, single buffered']
    #allocation9 [shape = 's32[1]{0}', space=sflag, size = 0x4, scoped, tag = 'scoped memory for tpu_custom_call.1']
    #allocation10 [shape = 'u8[4096]{0}', space=vmem, size = 0x1000, scoped, tag = 'input window, operand 4, single buffered']
    #allocation11 [shape = 'u8[4096]{0}', space=vmem, size = 0x1000, scoped, tag = 'output window, operand 0, single buffered']
    %10 = vsyncpa [#allocation3], 0
    %11 = vsyncpa [#allocation6], 0
    %12 = vsyncpa [#allocation9], 0
    %13 = vsyncpa [#allocation4], 0
    // Predicated region
    $region2: #{tpu_custom_call.1} parent=1 // pred_check
      _
    $region3: #{tpu_custom_call.1} parent=1 // pred_check_branch
      %15 = sbr.rel (0) target = $region5
    $region4: #{tpu_custom_call.1} parent=1 // pred_region
      %s17 = ssub.s32 256, 256
      %18 = vsyncadd [#allocation3], %s17
      %s19 = sshll.u32 [#allocation2], 4
      %s20 = int_to_ptr.vmem [resolvable:$true] %s19
      %25 = dma.hbm_to_vmem [thread:$0]  %s0, 256, %s20, [#allocation3], 128, 128, 8
    $region5: #{tpu_custom_call.1} parent=1 // pred_fallthru
      _
    // Predicated region
    $region6: #{tpu_custom_call.1} parent=1 // pred_check
      _
    $region7: #{tpu_custom_call.1} parent=1 // pred_check_branch
      %27 = sbr.rel (0) target = $region9
    $region8: #{tpu_custom_call.1} parent=1 // pred_region
      %s29 = ssub.s32 256, 256
      %30 = vsyncadd [#allocation6], %s29
      %s31 = sshll.u32 [#allocation5], 4
      %s32 = int_to_ptr.vmem [resolvable:$true] %s31
      %37 = dma.hbm_to_vmem [thread:$0]  %s1, 256, %s32, [#allocation6], 64, 64, 4
    $region9: #{tpu_custom_call.1} parent=1 // pred_fallthru
      _
    // Predicated region
    $region10: #{tpu_custom_call.1} parent=1 // pred_check
      _
    $region11: #{tpu_custom_call.1} parent=1 // pred_check_branch
      %39 = sbr.rel (0) target = $region13
    $region12: #{tpu_custom_call.1} parent=1 // pred_region
      %s41 = ssub.s32 3072, 3072
      %42 = vsyncadd [#allocation6], %s41
      %s43 = sshll.u32 [#allocation7], 4
      %s44 = int_to_ptr.vmem [resolvable:$true] %s43
      %49 = dma.hbm_to_vmem [thread:$0]  %s2, 3072, %s44, [#allocation6], 64, 64, 4
    $region13: #{tpu_custom_call.1} parent=1 // pred_fallthru
      _
    // Predicated region
    $region14: #{tpu_custom_call.1} parent=1 // pred_check
      _
    $region15: #{tpu_custom_call.1} parent=1 // pred_check_branch
      %51 = sbr.rel (0) target = $region17
    $region16: #{tpu_custom_call.1} parent=1 // pred_region
      %s53 = ssub.s32 1024, 1024
      %54 = vsyncadd [#allocation9], %s53
      %s55 = sshll.u32 [#allocation8], 4
      %s56 = int_to_ptr.vmem [resolvable:$true] %s55
      %61 = dma.hbm_to_vmem [thread:$0]  %s3, 1024, %s56, [#allocation9], 64, 64, 4
    $region17: #{tpu_custom_call.1} parent=1 // pred_fallthru
      _
    // Predicated region
    $region18: #{tpu_custom_call.1} parent=1 // pred_check
      _
    $region19: #{tpu_custom_call.1} parent=1 // pred_check_branch
      %63 = sbr.rel (0) target = $region21
    $region20: #{tpu_custom_call.1} parent=1 // pred_region
      %s65 = ssub.s32 128, 128
      %66 = vsyncadd [#allocation9], %s65
      %s68 = sshll.u32 [#allocation10], 4
      %s69 = int_to_ptr.vmem [resolvable:$true] %s68
      %71 = dma.hbm_to_vmem [thread:$0]  %s4, 128, %s69, [#allocation9]
    $region21: #{tpu_custom_call.1} parent=1 // pred_fallthru
      _
    // Predicated region
    $region22: #{tpu_custom_call.1} parent=1 // pred_check
      _
    $region23: #{tpu_custom_call.1} parent=1 // pred_check_branch
      %73 = sbr.rel (0) target = $region25
    $region24: #{tpu_custom_call.1} parent=1 // pred_region
      %74 = dma.done [#allocation3], 256
    $region25: #{tpu_custom_call.1} parent=1 // pred_fallthru
      _
    // Predicated region
    $region26: #{tpu_custom_call.1} parent=1 // pred_check
      _
    $region27: #{tpu_custom_call.1} parent=1 // pred_check_branch
      %76 = sbr.rel (0) target = $region29
    $region28: #{tpu_custom_call.1} parent=1 // pred_region
      %77 = dma.done [#allocation6], 256
    $region29: #{tpu_custom_call.1} parent=1 // pred_fallthru
      _
    // Predicated region
    $region30: #{tpu_custom_call.1} parent=1 // pred_check
      _
    $region31: #{tpu_custom_call.1} parent=1 // pred_check_branch
      %79 = sbr.rel (0) target = $region33
    $region32: #{tpu_custom_call.1} parent=1 // pred_region
      %80 = dma.done [#allocation6], 3072
    $region33: #{tpu_custom_call.1} parent=1 // pred_fallthru
      _
    // Predicated region
    $region34: #{tpu_custom_call.1} parent=1 // pred_check
      _
    $region35: #{tpu_custom_call.1} parent=1 // pred_check_branch
      %82 = sbr.rel (0) target = $region37
    $region36: #{tpu_custom_call.1} parent=1 // pred_region
      %83 = dma.done [#allocation9], 1024
    $region37: #{tpu_custom_call.1} parent=1 // pred_fallthru
      _
    // Predicated region
    $region38: #{tpu_custom_call.1} parent=1 // pred_check
      _
    $region39: #{tpu_custom_call.1} parent=1 // pred_check_branch
      %85 = sbr.rel (0) target = $region41
    $region40: #{tpu_custom_call.1} parent=1 // pred_region
      %86 = dma.done [#allocation9], 128
    $region41: #{tpu_custom_call.1} parent=1 // pred_fallthru
      _
    %v88 = vld [vmem:[#allocation2] sm:$0xff]
    %v89 = vld [vmem:[#allocation2 + $0x8] sm:$0xff]
    %v90 = vpack.c.bf16 %v89, %v88
    %v91 = vld [vmem:[#allocation5] sm:$0xf]
    %v92 = vld [vmem:[#allocation5 + $0x4] sm:$0xf]
    %v93 = vld [vmem:[#allocation5 + $0x8] sm:$0xf]
    %v94 = vld [vmem:[#allocation5 + $0xc] sm:$0xf]
    %v95 = vld [vmem:[#allocation10] sm:$0x1]
    %v96 = vlaneseq
    %v97 = vshrl.u32 %v96, 7
    %v98 = vsub.s32 0, %v97
    %v99 = vrot.slane %v95, %v98
    %v104 = vunpack.c.l.b16 %v91
    %v105 = vunpack.c.l.b16 %v92
    %v106 = vunpack.c.l.b16 %v93
    %v107 = vunpack.c.l.b16 %v94
    %v108 = vpack.c.b16 %v105, %v104
    %v109 = vpack.c.b16 %v107, %v106
    %vm112 = vcmask 261120
    %v114 = vsel %vm112, %v90, 0
    %116 = vmatprep.subr.bf16.mxu0 0
    %117 = vmatpush1.bf16.msra.mxu0 0
    %118 = vmatprep.subr.bf16.mxu0 0
    %119 = vmatpush1.bf16.msra.mxu0 0
    %120 = vmatprep.subr.bf16.mxu0 0
    %121 = vmatpush1.bf16.msra.mxu0 0
    %122 = vmatprep.subr.bf16.mxu0 0
    %123 = vmatpush1.bf16.msra.mxu0 0
    %124 = vmatprep.subr.bf16.mxu0 0
    %125 = vmatpush1.bf16.msra.mxu0 0
    %126 = vmatprep.subr.bf16.mxu0 0
    %127 = vmatpush1.bf16.msra.mxu0 0
    %128 = vmatprep.subr.bf16.mxu0 0
    %129 = vmatpush1.bf16.msra.mxu0 %v109
    %130 = vmatprep.subr.bf16.mxu0 0
    %131 = vmatpush1.bf16.msra.mxu0 %v108
    %132 = vmatprep.subr.bf16.mxu0 0
    %133 = vmatpush2.bf16.msra.mxu0 0
    %134 = vmatprep.subr.bf16.mxu0 0
    %135 = vmatpush2.bf16.msra.mxu0 0
    %136 = vmatprep.subr.bf16.mxu0 0
    %137 = vmatpush2.bf16.msra.mxu0 0
    %138 = vmatprep.subr.bf16.mxu0 0
    %139 = vmatpush2.bf16.msra.mxu0 0
    %140 = vmatprep.subr.bf16.mxu0 0
    %141 = vmatpush2.bf16.msra.mxu0 0
    %142 = vmatprep.subr.bf16.mxu0 0
    %143 = vmatpush2.bf16.msra.mxu0 0
    %144 = vmatprep.subr.bf16.mxu0 0
    %145 = vmatpush2.bf16.msra.mxu0 0
    %146 = vmatprep.subr.bf16.mxu0 0
    %147 = vmatpush2.bf16.msra.mxu0 0
    %148 = vmatprep.mubr.bf16.mxu0 0
    %149 = vmatmul.mubr.bf16.gmra.mxu0 %v114
    %v150 = vpop.f32.mrf.mxu0
    %v151 = vadd.f32 %v99, %v150
    %v152 = vpop.f32.mrf.mxu0
    %v153 = vpop.f32.mrf.mxu0
    %v154 = vadd.f32 %v99, %v153
    %v155 = vpop.f32.mrf.mxu0
    %156 = vdwg.mxu0
    %v157 = vmul.f32 %v151, 0.01
    %v158 = vmul.f32 %v154, 0.01
    %v159 = vmax.f32 %v151, %v157
    %v160 = vmax.f32 %v154, %v158
    %v161 = vpack.c.bf16 %v160, %v159
    %v162 = vld [vmem:[#allocation7] sm:$0xf]
    %v163 = vld [vmem:[#allocation7 + $0x4] sm:$0xf]
    %v164 = vld [vmem:[#allocation7 + $0x8] sm:$0xf]
    %v165 = vld [vmem:[#allocation7 + $0xc] sm:$0xf]
    %v166 = vld [vmem:[#allocation7 + $0x10] sm:$0xf]
    %v167 = vld [vmem:[#allocation7 + $0x14] sm:$0xf]
    %v168 = vld [vmem:[#allocation7 + $0x18] sm:$0xf]
    %v169 = vld [vmem:[#allocation7 + $0x1c] sm:$0xf]
    %v170 = vld [vmem:[#allocation7 + $0x20] sm:$0xf]
    %v171 = vld [vmem:[#allocation7 + $0x24] sm:$0xf]
    %v172 = vld [vmem:[#allocation7 + $0x28] sm:$0xf]
    %v173 = vld [vmem:[#allocation7 + $0x2c] sm:$0xf]
    %v174 = vld [vmem:[#allocation7 + $0x30] sm:$0xf]
    %v175 = vld [vmem:[#allocation7 + $0x34] sm:$0xf]
    %v176 = vld [vmem:[#allocation7 + $0x38] sm:$0xf]
    %v177 = vld [vmem:[#allocation7 + $0x3c] sm:$0xf]
    %v178 = vld [vmem:[#allocation10 + $0x1] sm:$0x1]
    %v179 = vlaneseq
    %v180 = vshrl.u32 %v179, 7
    %v181 = vsub.s32 0, %v180
    %v182 = vrot.slane %v178, %v181
    %v199 = vunpack.c.l.b16 %v162
    %v200 = vunpack.c.l.b16 %v163
    %v201 = vunpack.c.l.b16 %v164
    %v202 = vunpack.c.l.b16 %v165
    %v203 = vunpack.c.l.b16 %v166
    %v204 = vunpack.c.l.b16 %v167
    %v205 = vunpack.c.l.b16 %v168
    %v206 = vunpack.c.l.b16 %v169
    %v207 = vunpack.c.l.b16 %v170
    %v208 = vunpack.c.l.b16 %v171
    %v209 = vunpack.c.l.b16 %v172
    %v210 = vunpack.c.l.b16 %v173
    %v211 = vunpack.c.l.b16 %v174
    %v212 = vunpack.c.l.b16 %v175
    %v213 = vunpack.c.l.b16 %v176
    %v214 = vunpack.c.l.b16 %v177
    %v215 = vpack.c.b16 %v200, %v199
    %v216 = vpack.c.b16 %v202, %v201
    %v217 = vpack.c.b16 %v204, %v203
    %v218 = vpack.c.b16 %v206, %v205
    %v219 = vpack.c.b16 %v208, %v207
    %v220 = vpack.c.b16 %v210, %v209
    %v221 = vpack.c.b16 %v212, %v211
    %v222 = vpack.c.b16 %v214, %v213
    %231 = vmatprep.subr.bf16.mxu0 0
    %232 = vmatpush1.bf16.msra.mxu0 %v222
    %233 = vmatprep.subr.bf16.mxu0 0
    %234 = vmatpush1.bf16.msra.mxu0 %v221
    %235 = vmatprep.subr.bf16.mxu0 0
    %236 = vmatpush1.bf16.msra.mxu0 %v220
    %237 = vmatprep.subr.bf16.mxu0 0
    %238 = vmatpush1.bf16.msra.mxu0 %v219
    %239 = vmatprep.subr.bf16.mxu0 0
    %240 = vmatpush1.bf16.msra.mxu0 %v218
    %241 = vmatprep.subr.bf16.mxu0 0
    %242 = vmatpush1.bf16.msra.mxu0 %v217
    %243 = vmatprep.subr.bf16.mxu0 0
    %244 = vmatpush1.bf16.msra.mxu0 %v216
    %245 = vmatprep.subr.bf16.mxu0 0
    %246 = vmatpush1.bf16.msra.mxu0 %v215
    %247 = vmatprep.subr.bf16.mxu0 0
    %248 = vmatpush2.bf16.msra.mxu0 0
    %249 = vmatprep.subr.bf16.mxu0 0
    %250 = vmatpush2.bf16.msra.mxu0 0
    %251 = vmatprep.subr.bf16.mxu0 0
    %252 = vmatpush2.bf16.msra.mxu0 0
    %253 = vmatprep.subr.bf16.mxu0 0
    %254 = vmatpush2.bf16.msra.mxu0 0
    %255 = vmatprep.subr.bf16.mxu0 0
    %256 = vmatpush2.bf16.msra.mxu0 0
    %257 = vmatprep.subr.bf16.mxu0 0
    %258 = vmatpush2.bf16.msra.mxu0 0
    %259 = vmatprep.subr.bf16.mxu0 0
    %260 = vmatpush2.bf16.msra.mxu0 0
    %261 = vmatprep.subr.bf16.mxu0 0
    %262 = vmatpush2.bf16.msra.mxu0 0
    %263 = vmatprep.mubr.bf16.mxu0 0
    %264 = vmatmul.mubr.bf16.gmra.mxu0 %v161
    %v265 = vpop.f32.mrf.mxu0
    %v266 = vadd.f32 %v182, %v265
    %v267 = vpop.f32.mrf.mxu0
    %v268 = vpop.f32.mrf.mxu0
    %v269 = vadd.f32 %v182, %v268
    %v270 = vpop.f32.mrf.mxu0
    %271 = vdwg.mxu0
    %v272 = vmul.f32 %v266, 0.01
    %v273 = vmul.f32 %v269, 0.01
    %v274 = vmax.f32 %v266, %v272
    %v275 = vmax.f32 %v269, %v273
    %v276 = vpack.c.bf16 %v275, %v274
    %s277 = scalar_lea.vmem [#allocation7], 64
    %v278 = vld [vmem:[%s277] sm:$0xf]
    %v279 = vld [vmem:[%s277 + $0x4] sm:$0xf]
    %v280 = vld [vmem:[%s277 + $0x8] sm:$0xf]
    %v281 = vld [vmem:[%s277 + $0xc] sm:$0xf]
    %v282 = vld [vmem:[%s277 + $0x10] sm:$0xf]
    %v283 = vld [vmem:[%s277 + $0x14] sm:$0xf]
    %v284 = vld [vmem:[%s277 + $0x18] sm:$0xf]
    %v285 = vld [vmem:[%s277 + $0x1c] sm:$0xf]
    %v286 = vld [vmem:[%s277 + $0x20] sm:$0xf]
    %v287 = vld [vmem:[%s277 + $0x24] sm:$0xf]
    %v288 = vld [vmem:[%s277 + $0x28] sm:$0xf]
    %v289 = vld [vmem:[%s277 + $0x2c] sm:$0xf]
    %v290 = vld [vmem:[%s277 + $0x30] sm:$0xf]
    %v291 = vld [vmem:[%s277 + $0x34] sm:$0xf]
    %v292 = vld [vmem:[%s277 + $0x38] sm:$0xf]
    %v293 = vld [vmem:[%s277 + $0x3c] sm:$0xf]
    %v294 = vld [vmem:[#allocation10 + $0x2] sm:$0x1]
    %v295 = vlaneseq
    %v296 = vshrl.u32 %v295, 7
    %v297 = vsub.s32 0, %v296
    %v298 = vrot.slane %v294, %v297
    %v315 = vunpack.c.l.b16 %v278
    %v316 = vunpack.c.l.b16 %v279
    %v317 = vunpack.c.l.b16 %v280
    %v318 = vunpack.c.l.b16 %v281
    %v319 = vunpack.c.l.b16 %v282
    %v320 = vunpack.c.l.b16 %v283
    %v321 = vunpack.c.l.b16 %v284
    %v322 = vunpack.c.l.b16 %v285
    %v323 = vunpack.c.l.b16 %v286
    %v324 = vunpack.c.l.b16 %v287
    %v325 = vunpack.c.l.b16 %v288
    %v326 = vunpack.c.l.b16 %v289
    %v327 = vunpack.c.l.b16 %v290
    %v328 = vunpack.c.l.b16 %v291
    %v329 = vunpack.c.l.b16 %v292
    %v330 = vunpack.c.l.b16 %v293
    %v331 = vpack.c.b16 %v316, %v315
    %v332 = vpack.c.b16 %v318, %v317
    %v333 = vpack.c.b16 %v320, %v319
    %v334 = vpack.c.b16 %v322, %v321
    %v335 = vpack.c.b16 %v324, %v323
    %v336 = vpack.c.b16 %v326, %v325
    %v337 = vpack.c.b16 %v328, %v327
    %v338 = vpack.c.b16 %v330, %v329
    %347 = vmatprep.subr.bf16.mxu0 0
    %348 = vmatpush1.bf16.msra.mxu0 %v338
    %349 = vmatprep.subr.bf16.mxu0 0
    %350 = vmatpush1.bf16.msra.mxu0 %v337
    %351 = vmatprep.subr.bf16.mxu0 0
    %352 = vmatpush1.bf16.msra.mxu0 %v336
    %353 = vmatprep.subr.bf16.mxu0 0
    %354 = vmatpush1.bf16.msra.mxu0 %v335
    %355 = vmatprep.subr.bf16.mxu0 0
    %356 = vmatpush1.bf16.msra.mxu0 %v334
    %357 = vmatprep.subr.bf16.mxu0 0
    %358 = vmatpush1.bf16.msra.mxu0 %v333
    %359 = vmatprep.subr.bf16.mxu0 0
    %360 = vmatpush1.bf16.msra.mxu0 %v332
    %361 = vmatprep.subr.bf16.mxu0 0
    %362 = vmatpush1.bf16.msra.mxu0 %v331
    %363 = vmatprep.subr.bf16.mxu0 0
    %364 = vmatpush2.bf16.msra.mxu0 0
    %365 = vmatprep.subr.bf16.mxu0 0
    %366 = vmatpush2.bf16.msra.mxu0 0
    %367 = vmatprep.subr.bf16.mxu0 0
    %368 = vmatpush2.bf16.msra.mxu0 0
    %369 = vmatprep.subr.bf16.mxu0 0
    %370 = vmatpush2.bf16.msra.mxu0 0
    %371 = vmatprep.subr.bf16.mxu0 0
    %372 = vmatpush2.bf16.msra.mxu0 0
    %373 = vmatprep.subr.bf16.mxu0 0
    %374 = vmatpush2.bf16.msra.mxu0 0
    %375 = vmatprep.subr.bf16.mxu0 0
    %376 = vmatpush2.bf16.msra.mxu0 0
    %377 = vmatprep.subr.bf16.mxu0 0
    %378 = vmatpush2.bf16.msra.mxu0 0
    %379 = vmatprep.mubr.bf16.mxu0 0
    %380 = vmatmul.mubr.bf16.gmra.mxu0 %v276
    %v381 = vpop.f32.mrf.mxu0
    %v382 = vadd.f32 %v298, %v381
    %v383 = vpop.f32.mrf.mxu0
    %v384 = vpop.f32.mrf.mxu0
    %v385 = vadd.f32 %v298, %v384
    %v386 = vpop.f32.mrf.mxu0
    %387 = vdwg.mxu0
    %v388 = vmul.f32 %v382, 0.01
    %v389 = vmul.f32 %v385, 0.01
    %v390 = vmax.f32 %v382, %v388
    %v391 = vmax.f32 %v385, %v389
    %v392 = vpack.c.bf16 %v391, %v390
    %s393 = scalar_lea.vmem [#allocation7], 128
    %v394 = vld [vmem:[%s393] sm:$0xf]
    %v395 = vld [vmem:[%s393 + $0x4] sm:$0xf]
    %v396 = vld [vmem:[%s393 + $0x8] sm:$0xf]
    %v397 = vld [vmem:[%s393 + $0xc] sm:$0xf]
    %v398 = vld [vmem:[%s393 + $0x10] sm:$0xf]
    %v399 = vld [vmem:[%s393 + $0x14] sm:$0xf]
    %v400 = vld [vmem:[%s393 + $0x18] sm:$0xf]
    %v401 = vld [vmem:[%s393 + $0x1c] sm:$0xf]
    %v402 = vld [vmem:[%s393 + $0x20] sm:$0xf]
    %v403 = vld [vmem:[%s393 + $0x24] sm:$0xf]
    %v404 = vld [vmem:[%s393 + $0x28] sm:$0xf]
    %v405 = vld [vmem:[%s393 + $0x2c] sm:$0xf]
    %v406 = vld [vmem:[%s393 + $0x30] sm:$0xf]
    %v407 = vld [vmem:[%s393 + $0x34] sm:$0xf]
    %v408 = vld [vmem:[%s393 + $0x38] sm:$0xf]
    %v409 = vld [vmem:[%s393 + $0x3c] sm:$0xf]
    %v410 = vld [vmem:[#allocation10 + $0x3] sm:$0x1]
    %v411 = vlaneseq
    %v412 = vshrl.u32 %v411, 7
    %v413 = vsub.s32 0, %v412
    %v414 = vrot.slane %v410, %v413
    %v431 = vunpack.c.l.b16 %v394
    %v432 = vunpack.c.l.b16 %v395
    %v433 = vunpack.c.l.b16 %v396
    %v434 = vunpack.c.l.b16 %v397
    %v435 = vunpack.c.l.b16 %v398
    %v436 = vunpack.c.l.b16 %v399
    %v437 = vunpack.c.l.b16 %v400
    %v438 = vunpack.c.l.b16 %v401
    %v439 = vunpack.c.l.b16 %v402
    %v440 = vunpack.c.l.b16 %v403
    %v441 = vunpack.c.l.b16 %v404
    %v442 = vunpack.c.l.b16 %v405
    %v443 = vunpack.c.l.b16 %v406
    %v444 = vunpack.c.l.b16 %v407
    %v445 = vunpack.c.l.b16 %v408
    %v446 = vunpack.c.l.b16 %v409
    %v447 = vpack.c.b16 %v432, %v431
    %v448 = vpack.c.b16 %v434, %v433
    %v449 = vpack.c.b16 %v436, %v435
    %v450 = vpack.c.b16 %v438, %v437
    %v451 = vpack.c.b16 %v440, %v439
    %v452 = vpack.c.b16 %v442, %v441
    %v453 = vpack.c.b16 %v444, %v443
    %v454 = vpack.c.b16 %v446, %v445
    %463 = vmatprep.subr.bf16.mxu0 0
    %464 = vmatpush1.bf16.msra.mxu0 %v454
    %465 = vmatprep.subr.bf16.mxu0 0
    %466 = vmatpush1.bf16.msra.mxu0 %v453
    %467 = vmatprep.subr.bf16.mxu0 0
    %468 = vmatpush1.bf16.msra.mxu0 %v452
    %469 = vmatprep.subr.bf16.mxu0 0
    %470 = vmatpush1.bf16.msra.mxu0 %v451
    %471 = vmatprep.subr.bf16.mxu0 0
    %472 = vmatpush1.bf16.msra.mxu0 %v450
    %473 = vmatprep.subr.bf16.mxu0 0
    %474 = vmatpush1.bf16.msra.mxu0 %v449
    %475 = vmatprep.subr.bf16.mxu0 0
    %476 = vmatpush1.bf16.msra.mxu0 %v448
    %477 = vmatprep.subr.bf16.mxu0 0
    %478 = vmatpush1.bf16.msra.mxu0 %v447
    %479 = vmatprep.subr.bf16.mxu0 0
    %480 = vmatpush2.bf16.msra.mxu0 0
    %481 = vmatprep.subr.bf16.mxu0 0
    %482 = vmatpush2.bf16.msra.mxu0 0
    %483 = vmatprep.subr.bf16.mxu0 0
    %484 = vmatpush2.bf16.msra.mxu0 0
    %485 = vmatprep.subr.bf16.mxu0 0
    %486 = vmatpush2.bf16.msra.mxu0 0
    %487 = vmatprep.subr.bf16.mxu0 0
    %488 = vmatpush2.bf16.msra.mxu0 0
    %489 = vmatprep.subr.bf16.mxu0 0
    %490 = vmatpush2.bf16.msra.mxu0 0
    %491 = vmatprep.subr.bf16.mxu0 0
    %492 = vmatpush2.bf16.msra.mxu0 0
    %493 = vmatprep.subr.bf16.mxu0 0
    %494 = vmatpush2.bf16.msra.mxu0 0
    %495 = vmatprep.mubr.bf16.mxu0 0
    %496 = vmatmul.mubr.bf16.gmra.mxu0 %v392
    %v497 = vpop.f32.mrf.mxu0
    %v498 = vadd.f32 %v414, %v497
    %v499 = vpop.f32.mrf.mxu0
    %v500 = vpop.f32.mrf.mxu0
    %v501 = vadd.f32 %v414, %v500
    %v502 = vpop.f32.mrf.mxu0
    %503 = vdwg.mxu0
    %v504 = vmul.f32 %v498, 0.01
    %v505 = vmul.f32 %v501, 0.01
    %v506 = vmax.f32 %v498, %v504
    %v507 = vmax.f32 %v501, %v505
    %v508 = vpack.c.bf16 %v507, %v506
    %v509 = vld [vmem:[#allocation8] sm:$0xf]
    %v510 = vld [vmem:[#allocation8 + $0x4] sm:$0xf]
    %v511 = vld [vmem:[#allocation8 + $0x8] sm:$0xf]
    %v512 = vld [vmem:[#allocation8 + $0xc] sm:$0xf]
    %v513 = vld [vmem:[#allocation8 + $0x10] sm:$0xf]
    %v514 = vld [vmem:[#allocation8 + $0x14] sm:$0xf]
    %v515 = vld [vmem:[#allocation8 + $0x18] sm:$0xf]
    %v516 = vld [vmem:[#allocation8 + $0x1c] sm:$0xf]
    %v517 = vld [vmem:[#allocation8 + $0x20] sm:$0xf]
    %v518 = vld [vmem:[#allocation8 + $0x24] sm:$0xf]
    %v519 = vld [vmem:[#allocation8 + $0x28] sm:$0xf]
    %v520 = vld [vmem:[#allocation8 + $0x2c] sm:$0xf]
    %v521 = vld [vmem:[#allocation8 + $0x30] sm:$0xf]
    %v522 = vld [vmem:[#allocation8 + $0x34] sm:$0xf]
    %v523 = vld [vmem:[#allocation8 + $0x38] sm:$0xf]
    %v524 = vld [vmem:[#allocation8 + $0x3c] sm:$0xf]
    %v525 = vld [vmem:[#allocation10 + $0x4] sm:$0x1]
    %v526 = vlaneseq
    %v527 = vshrl.u32 %v526, 7
    %v528 = vsub.s32 0, %v527
    %v529 = vrot.slane %v525, %v528
    %v546 = vunpack.c.l.b16 %v509
    %v547 = vunpack.c.l.b16 %v510
    %v548 = vunpack.c.l.b16 %v511
    %v549 = vunpack.c.l.b16 %v512
    %v550 = vunpack.c.l.b16 %v513
    %v551 = vunpack.c.l.b16 %v514
    %v552 = vunpack.c.l.b16 %v515
    %v553 = vunpack.c.l.b16 %v516
    %v554 = vunpack.c.l.b16 %v517
    %v555 = vunpack.c.l.b16 %v518
    %v556 = vunpack.c.l.b16 %v519
    %v557 = vunpack.c.l.b16 %v520
    %v558 = vunpack.c.l.b16 %v521
    %v559 = vunpack.c.l.b16 %v522
    %v560 = vunpack.c.l.b16 %v523
    %v561 = vunpack.c.l.b16 %v524
    %v562 = vpack.c.b16 %v547, %v546
    %v563 = vpack.c.b16 %v549, %v548
    %v564 = vpack.c.b16 %v551, %v550
    %v565 = vpack.c.b16 %v553, %v552
    %v566 = vpack.c.b16 %v555, %v554
    %v567 = vpack.c.b16 %v557, %v556
    %v568 = vpack.c.b16 %v559, %v558
    %v569 = vpack.c.b16 %v561, %v560
    %578 = vmatprep.subr.bf16.mxu0 0
    %579 = vmatpush1.bf16.msra.mxu0 %v569
    %580 = vmatprep.subr.bf16.mxu0 0
    %581 = vmatpush1.bf16.msra.mxu0 %v568
    %582 = vmatprep.subr.bf16.mxu0 0
    %583 = vmatpush1.bf16.msra.mxu0 %v567
    %584 = vmatprep.subr.bf16.mxu0 0
    %585 = vmatpush1.bf16.msra.mxu0 %v566
    %586 = vmatprep.subr.bf16.mxu0 0
    %587 = vmatpush1.bf16.msra.mxu0 %v565
    %588 = vmatprep.subr.bf16.mxu0 0
    %589 = vmatpush1.bf16.msra.mxu0 %v564
    %590 = vmatprep.subr.bf16.mxu0 0
    %591 = vmatpush1.bf16.msra.mxu0 %v563
    %592 = vmatprep.subr.bf16.mxu0 0
    %593 = vmatpush1.bf16.msra.mxu0 %v562
    %594 = vmatprep.subr.bf16.mxu0 0
    %595 = vmatpush2.bf16.msra.mxu0 0
    %596 = vmatprep.subr.bf16.mxu0 0
    %597 = vmatpush2.bf16.msra.mxu0 0
    %598 = vmatprep.subr.bf16.mxu0 0
    %599 = vmatpush2.bf16.msra.mxu0 0
    %600 = vmatprep.subr.bf16.mxu0 0
    %601 = vmatpush2.bf16.msra.mxu0 0
    %602 = vmatprep.subr.bf16.mxu0 0
    %603 = vmatpush2.bf16.msra.mxu0 0
    %604 = vmatprep.subr.bf16.mxu0 0
    %605 = vmatpush2.bf16.msra.mxu0 0
    %606 = vmatprep.subr.bf16.mxu0 0
    %607 = vmatpush2.bf16.msra.mxu0 0
    %608 = vmatprep.subr.bf16.mxu0 0
    %609 = vmatpush2.bf16.msra.mxu0 0
    %610 = vmatprep.mubr.bf16.mxu0 0
    %611 = vmatmul.mubr.bf16.gmra.mxu0 %v508
    %v612 = vpop.f32.mrf.mxu0
    %v613 = vadd.f32 %v529, %v612
    %v614 = vpop.f32.mrf.mxu0
    %v615 = vpop.f32.mrf.mxu0
    %v616 = vadd.f32 %v529, %v615
    %v617 = vpop.f32.mrf.mxu0
    %618 = vdwg.mxu0
    %v619 = vpack.c.bf16 %v616, %v613
    %v621 = vunpack.c.l.b16 %v619
    %v622 = vunpack.c.h.b16 %v619
    %v623 = vpack.c.b16 %v621, %v621
    %v624 = vpack.c.b16 %v622, %v622
    %627 = vst [vmem:[#allocation11] sm:$0xf] %v623
    %628 = vst [vmem:[#allocation11 + $0x4] sm:$0xf] %v624
    // Predicated region
    $region42: #{tpu_custom_call.1} parent=1 // pred_check
      _
    $region43: #{tpu_custom_call.1} parent=1 // pred_check_branch
      %630 = sbr.rel (0) target = $region45
    $region44: #{tpu_custom_call.1} parent=1 // pred_region
      %s632 = ssub.s32 128, 128
      %633 = vsyncadd [#allocation4], %s632
      %s634 = sshll.u32 [#allocation11], 4
      %s635 = int_to_ptr.vmem [resolvable:$true] %s634
      %640 = dma.vmem_to_hbm [thread:$0]  %s635, 128, %s5, [#allocation4], 64, 64, 4
    $region45: #{tpu_custom_call.1} parent=1 // pred_fallthru
      _
    // Predicated region
    $region46: #{tpu_custom_call.1} parent=1 // pred_check
      _
    $region47: #{tpu_custom_call.1} parent=1 // pred_check_branch
      %642 = sbr.rel (0) target = $region49
    $region48: #{tpu_custom_call.1} parent=1 // pred_region
      %643 = dma.done [#allocation4], 128
    $region49: #{tpu_custom_call.1} parent=1 // pred_fallthru
      _
    %644 = vsyncpa [#allocation3], 1
    %645 = vsyncpa [#allocation6], 1
    %646 = vsyncpa [#allocation9], 1
    %647 = vsyncpa [#allocation4], 1

</llo_original>
